<compile_context>
chip_gen: v7x
topology: tpu7x:2x2x1
jax: 0.10.0
libtpu: 0.0.40
codegen_flags: <defaults>
</compile_context>

<pallas_src>
import jax
import jax.numpy as jnp
from jax.experimental import pallas as pl
from jax.experimental.pallas import tpu as pltpu


_TARGET_TILE_BYTES = 8 * 1024 * 1024  # streamed x bytes per grid step


def _round_up(x, m):
    return ((x + m - 1) // m) * m


def _row_granule(itemsize):
    # Sublane packing of the second-minor dim: 8 rows for 4-byte dtypes,
    # 16 for 2-byte (bf16), 32 for 1-byte.
    return 8 * max(1, 4 // int(itemsize))


def _vmem_capacity_bytes():
    """Physical VMEM of the attached TPU; conservative (v7x) fallback."""
    try:
        cap = int(pltpu.get_tpu_info().vmem_capacity_bytes)
        if cap > 0:
            return cap
    except Exception:
        pass
    return 64 * 1024 * 1024  # v7x (smallest); safe lower bound everywhere


def _select_tile_n(n, embedding_dim, x_itemsize, vmem_cap):
    granule = _row_granule(x_itemsize)
    row_bytes = embedding_dim * x_itemsize
    # Big enough that the per-step ~0.35us overhead is noise next to the DMA.
    tile_n = max(granule, _TARGET_TILE_BYTES // row_bytes)
    # Cap double-buffered x (2 * tile_n * row_bytes) at ~5/8 of physical VMEM
    # (~40 MiB on v7x, ~80 MiB on v5e/v6e) so the pipeline never spills.
    vmem_cap_rows = max(granule, ((vmem_cap * 5) // 8) // (2 * row_bytes))
    tile_n = min(tile_n, vmem_cap_rows)
    # Keep at least 2 grid steps so v7x's two TensorCores both get work under
    # dimension_semantics=("parallel",); harmless on single-TC v5e/v6e.
    half_rows = _round_up(max(1, -(-n // 2)), granule)
    tile_n = min(tile_n, half_rows)
    return int(max(granule, (tile_n // granule) * granule))


def dense_network_kernel(x_ref, w1_ref, b1_ref, w2_ref, b2_ref, w3_ref, b3_ref,
                         out_ref):
    x = x_ref[...]                                   # (TILE_N, E), at-rest dtype

    # Layer 1: Linear(E -> E//4) + ReLU.  MXU matmul (operands in the weight
    # dtype, f32 accumulation); bias add / ReLU stay in f32 on the VPU.
    h1 = jnp.dot(x.astype(w1_ref.dtype), w1_ref[...],
                 preferred_element_type=jnp.float32)
    h1 = jnp.maximum(h1 + b1_ref[...], 0.0)

    # Layer 2: Linear(E//4 -> E//16) + ReLU.
    h2 = jnp.dot(h1.astype(w2_ref.dtype), w2_ref[...],
                 preferred_element_type=jnp.float32)
    h2 = jnp.maximum(h2 + b2_ref[...], 0.0)

    # Layer 3: Linear(E//16 -> 1).  A 1-wide MXU matmul would drain 1-live-lane
    # vregs through the MRF; do it as a VPU broadcast-mul + lane reduce.
    w3_row = w3_ref[...].astype(jnp.float32)         # (1, E//16)
    y = jnp.sum(h2 * w3_row, axis=-1, keepdims=True) + b3_ref[...]  # (TILE_N,1)

    out_ref[...] = y.astype(out_ref.dtype)


def dense_network_forward(x, params, *, tile_n=None, compute_dtype=None):
    """Reproduces torch DenseNetwork.forward: x.reshape(-1, E) -> MLP -> (N, 1).

    compute_dtype: optional dtype (e.g. jnp.bfloat16) for the MXU weight
    operands.  Only the (tiny, VMEM-resident) weights are cast in the wrapper;
    x is streamed in its at-rest dtype and cast in-kernel, so there is no
    extra HBM round trip.  Accumulation / bias / ReLU stay in float32.
    """
    w1, b1, w2, b2, w3, b3 = params
    embedding_dim = w1.shape[0]

    x2d = x.reshape((-1, embedding_dim))
    n = x2d.shape[0]

    if compute_dtype is not None:
        w1 = w1.astype(compute_dtype)
        w2 = w2.astype(compute_dtype)
        w3 = w3.astype(compute_dtype)

    # Biases / final weight laid out as rows; elementwise work is kept in f32.
    b1r = b1.astype(jnp.float32).reshape(1, -1)
    b2r = b2.astype(jnp.float32).reshape(1, -1)
    w3r = w3.reshape(1, -1)                    # (1, E//16) for the VPU reduce
    b3r = b3.astype(jnp.float32).reshape(1, 1)

    x_itemsize = jnp.dtype(x2d.dtype).itemsize
    vmem_cap = _vmem_capacity_bytes()
    granule = _row_granule(x_itemsize)

    if tile_n is None:
        tile_n = _select_tile_n(n, embedding_dim, x_itemsize, vmem_cap)
    else:
        tile_n = int(tile_n)
        tile_n = min(tile_n, _round_up(max(n, 1), granule))
        tile_n = max(granule, _round_up(tile_n, granule))

    num_tiles = pl.cdiv(n, tile_n)

    # Generation-aware scoped-VMEM limit: ~48 MiB on v7x (64 MiB physical),
    # ~96 MiB on v5e/v6e (128 MiB physical).
    vmem_limit = int(max(32 * 1024 * 1024,
                         min((vmem_cap * 3) // 4,
                             vmem_cap - 16 * 1024 * 1024)))

    out = pl.pallas_call(
        dense_network_kernel,
        # No jnp.pad: out_shape is exactly (n, 1); Pallas masks the ragged
        # final block's stores, and the clipped final x read computes garbage
        # rows that never get written back.
        out_shape=jax.ShapeDtypeStruct((n, 1), jnp.float32),
        grid_spec=pltpu.PrefetchScalarGridSpec(
            num_scalar_prefetch=0,
            grid=(num_tiles,),
            in_specs=[
                # x streamed tile-by-tile (double-buffered by Pallas).
                pl.BlockSpec((tile_n, embedding_dim), lambda i: (i, 0)),
                # Weights / biases: constant index map -> VMEM-resident.
                pl.BlockSpec(w1.shape, lambda i: (0, 0)),
                pl.BlockSpec(b1r.shape, lambda i: (0, 0)),
                pl.BlockSpec(w2.shape, lambda i: (0, 0)),
                pl.BlockSpec(b2r.shape, lambda i: (0, 0)),
                pl.BlockSpec(w3r.shape, lambda i: (0, 0)),
                pl.BlockSpec(b3r.shape, lambda i: (0, 0)),
            ],
            out_specs=pl.BlockSpec((tile_n, 1), lambda i: (i, 0)),
        ),
        compiler_params=pltpu.CompilerParams(
            # Rows are independent -> let v7x shard tiles across its 2 TCs.
            dimension_semantics=("parallel",),
            vmem_limit_bytes=vmem_limit,
        ),
    )(x2d, w1, b1r, w2, b2r, w3r, b3r)

    return out


def init_params(key, embedding_dim):
    """Deterministic synthetic parameters, stored pre-transposed as (in, out)
    so the kernel computes x @ W + b  (== nn.Linear's x @ W.T + b)."""
    d1 = embedding_dim // 4
    d2 = embedding_dim // 16
    k1, k2, k3, k4, k5, k6 = jax.random.split(key, 6)
    w1 = jax.random.normal(k1, (embedding_dim, d1), jnp.float32) * 0.05
    b1 = jax.random.normal(k2, (d1,), jnp.float32) * 0.01
    w2 = jax.random.normal(k3, (d1, d2), jnp.float32) * 0.05
    b2 = jax.random.normal(k4, (d2,), jnp.float32) * 0.01
    w3 = jax.random.normal(k5, (d2, 1), jnp.float32) * 0.05
    b3 = jax.random.normal(k6, (1,), jnp.float32) * 0.01
    return (w1, b1, w2, b2, w3, b3)


def reference_forward(x, params, compute_dtype=None):
    """Pure-JAX reference mirroring the kernel's precision choices."""
    w1, b1, w2, b2, w3, b3 = params
    e = w1.shape[0]
    if compute_dtype is not None:
        w1 = w1.astype(compute_dtype)
        w2 = w2.astype(compute_dtype)
        w3 = w3.astype(compute_dtype)
    h = x.reshape((-1, e))
    h1 = jnp.maximum(
        jnp.dot(h.astype(w1.dtype), w1, preferred_element_type=jnp.float32)
        + b1.astype(jnp.float32), 0.0)
    h2 = jnp.maximum(
        jnp.dot(h1.astype(w2.dtype), w2, preferred_element_type=jnp.float32)
        + b2.astype(jnp.float32), 0.0)
    y = (jnp.sum(h2 * w3.astype(jnp.float32).reshape(1, -1),
                 axis=-1, keepdims=True)
         + b3.astype(jnp.float32))
    return y


if __name__ == "__main__":
    embedding_dim = 256          # hidden sizes 64, 16, 1 (NoMaD encoding size)
    batch, seq = 2, 8            # forward flattens to (batch*seq, E) = (16, E)

    key = jax.random.PRNGKey(0)
    kx, kx2, kp = jax.random.split(key, 3)
    params = init_params(kp, embedding_dim)

    # Small shape: 2 tiny tiles (the >=2-tile clamp keeps both TCs busy).
    x_small = jax.random.normal(kx, (batch, seq, embedding_dim), jnp.float32)
    out_small = jax.block_until_ready(dense_network_forward(x_small, params))
    ref_small = reference_forward(x_small, params)
    assert out_small.shape == (batch * seq, 1)
    assert jnp.allclose(out_small, ref_small, atol=1e-4, rtol=1e-4), \
        float(jnp.max(jnp.abs(out_small - ref_small)))

    # Large, non-divisible row count: exercises full-size streaming tiles plus
    # the ragged (masked) final block with no wrapper-side jnp.pad.
    n_big = 20000
    x_big = jax.random.normal(kx2, (n_big, embedding_dim), jnp.float32)
    out_big = jax.block_until_ready(dense_network_forward(x_big, params))
    ref_big = reference_forward(x_big, params)
    assert out_big.shape == (n_big, 1)
    assert jnp.allclose(out_big, ref_big, atol=1e-4, rtol=1e-4), \
        float(jnp.max(jnp.abs(out_big - ref_big)))

    # bf16-at-rest x + bf16 weights: halves the HBM read traffic (no wrapper
    # astype pass); f32 accumulation / bias / ReLU.
    x_bf16 = x_big.astype(jnp.bfloat16)
    out_bf16 = jax.block_until_ready(
        dense_network_forward(x_bf16, params, compute_dtype=jnp.bfloat16))
    ref_bf16 = reference_forward(x_bf16, params, compute_dtype=jnp.bfloat16)
    assert out_bf16.shape == (n_big, 1)
    assert jnp.allclose(out_bf16, ref_bf16, atol=2e-3, rtol=2e-2), \
        float(jnp.max(jnp.abs(out_bf16 - ref_bf16)))

    print("KERNEL_OK")
</pallas_src>

<mosaic_0001>
module attributes {stable_mosaic.version = 11 : i64} {
  func.func @dense_network_kernel(%arg0: i32, %arg1: memref<8x256xf32, #tpu.memory_space<vmem>>, %arg2: memref<256x64xf32, #tpu.memory_space<vmem>>, %arg3: memref<1x64xf32, #tpu.memory_space<vmem>>, %arg4: memref<64x16xf32, #tpu.memory_space<vmem>>, %arg5: memref<1x16xf32, #tpu.memory_space<vmem>>, %arg6: memref<1x16xf32, #tpu.memory_space<vmem>>, %arg7: memref<1x1xf32, #tpu.memory_space<vmem>>, %arg8: memref<8x1xf32, #tpu.memory_space<vmem>>) attributes {dimension_semantics = [#tpu.dimension_semantics<parallel>], iteration_bounds = array<i64: 2>, scalar_prefetch = 0 : i64, scratch_operands = 0 : i64, tpu.core_type = #tpu.core_type<tc>, window_params = [{transform_indices = @transform_0, window_bounds = array<i64: 8, 256>}, {pipeline_mode = #tpu.pipeline_mode<synchronous>, transform_indices = @transform_1, window_bounds = array<i64: 256, 64>}, {pipeline_mode = #tpu.pipeline_mode<synchronous>, transform_indices = @transform_2, window_bounds = array<i64: 1, 64>}, {pipeline_mode = #tpu.pipeline_mode<synchronous>, transform_indices = @transform_3, window_bounds = array<i64: 64, 16>}, {pipeline_mode = #tpu.pipeline_mode<synchronous>, transform_indices = @transform_4, window_bounds = array<i64: 1, 16>}, {pipeline_mode = #tpu.pipeline_mode<synchronous>, transform_indices = @transform_5, window_bounds = array<i64: 1, 16>}, {pipeline_mode = #tpu.pipeline_mode<synchronous>, transform_indices = @transform_6, window_bounds = array<i64: 1, 1>}, {transform_indices = @transform_7, window_bounds = array<i64: 8, 1>}]} {
    %c0 = arith.constant 0 : index
    %c0_0 = arith.constant 0 : index
    %0 = vector.load %arg1[%c0, %c0_0] : memref<8x256xf32, #tpu.memory_space<vmem>>, vector<8x256xf32>
    %c0_1 = arith.constant 0 : index
    %c0_2 = arith.constant 0 : index
    %1 = vector.load %arg2[%c0_1, %c0_2] : memref<256x64xf32, #tpu.memory_space<vmem>>, vector<256x64xf32>
    %cst = arith.constant dense<0.000000e+00> : vector<8x64xf32>
    %2 = tpu.matmul %0, %1, %cst {dimension_numbers = #tpu.dot_dimension_numbers<[1], [0], [0], [1], [0, 0, 1, 1], [], []>} : vector<8x256xf32>, vector<256x64xf32>, vector<8x64xf32> -> vector<8x64xf32>
    %c0_3 = arith.constant 0 : index
    %c0_4 = arith.constant 0 : index
    %3 = vector.load %arg3[%c0_3, %c0_4] : memref<1x64xf32, #tpu.memory_space<vmem>>, vector<1x64xf32>
    %4 = vector.broadcast %3 : vector<1x64xf32> to vector<8x64xf32>
    %5 = arith.addf %2, %4 : vector<8x64xf32>
    %cst_5 = arith.constant 0.000000e+00 : f32
    %6 = vector.broadcast %cst_5 : f32 to vector<8x64xf32>
    %7 = arith.maximumf %5, %6 : vector<8x64xf32>
    %c0_6 = arith.constant 0 : index
    %c0_7 = arith.constant 0 : index
    %8 = vector.load %arg4[%c0_6, %c0_7] : memref<64x16xf32, #tpu.memory_space<vmem>>, vector<64x16xf32>
    %cst_8 = arith.constant dense<0.000000e+00> : vector<8x16xf32>
    %9 = tpu.matmul %7, %8, %cst_8 {dimension_numbers = #tpu.dot_dimension_numbers<[1], [0], [0], [1], [0, 0, 1, 1], [], []>} : vector<8x64xf32>, vector<64x16xf32>, vector<8x16xf32> -> vector<8x16xf32>
    %c0_9 = arith.constant 0 : index
    %c0_10 = arith.constant 0 : index
    %10 = vector.load %arg5[%c0_9, %c0_10] : memref<1x16xf32, #tpu.memory_space<vmem>>, vector<1x16xf32>
    %11 = vector.broadcast %10 : vector<1x16xf32> to vector<8x16xf32>
    %12 = arith.addf %9, %11 : vector<8x16xf32>
    %cst_11 = arith.constant 0.000000e+00 : f32
    %13 = vector.broadcast %cst_11 : f32 to vector<8x16xf32>
    %14 = arith.maximumf %12, %13 : vector<8x16xf32>
    %c0_12 = arith.constant 0 : index
    %c0_13 = arith.constant 0 : index
    %15 = vector.load %arg6[%c0_12, %c0_13] : memref<1x16xf32, #tpu.memory_space<vmem>>, vector<1x16xf32>
    %16 = vector.broadcast %15 : vector<1x16xf32> to vector<8x16xf32>
    %17 = arith.mulf %14, %16 : vector<8x16xf32>
    %cst_14 = arith.constant dense<0.000000e+00> : vector<8xf32>
    %18 = vector.multi_reduction <add>, %17, %cst_14 [1] : vector<8x16xf32> to vector<8xf32>
    %19 = vector.shape_cast %18 : vector<8xf32> to vector<8x1xf32>
    %c0_15 = arith.constant 0 : index
    %c0_16 = arith.constant 0 : index
    %20 = vector.load %arg7[%c0_15, %c0_16] : memref<1x1xf32, #tpu.memory_space<vmem>>, vector<1x1xf32>
    %21 = vector.broadcast %20 : vector<1x1xf32> to vector<8x1xf32>
    %22 = arith.addf %19, %21 : vector<8x1xf32>
    %c0_17 = arith.constant 0 : index
    %c0_18 = arith.constant 0 : index
    %23 = vector.load %arg8[%c0_17, %c0_18] : memref<8x1xf32, #tpu.memory_space<vmem>>, vector<8x1xf32>
    tpu.vector_store %arg8[%c0_17, %c0_18], %22 {strides = array<i32>} : memref<8x1xf32, #tpu.memory_space<vmem>>, vector<8x1xf32>,
    return
  }
  func.func @transform_0(%arg0: i32) -> (i32, i32) {
    %c0_i32 = arith.constant 0 : i32
    %c0_i32_0 = arith.constant 0 : i32
    return %arg0, %c0_i32 : i32, i32
  }
  func.func @transform_1(%arg0: i32) -> (i32, i32) {
    %c0_i32 = arith.constant 0 : i32
    %c0_i32_0 = arith.constant 0 : i32
    %c0_i32_1 = arith.constant 0 : i32
    return %c0_i32, %c0_i32_0 : i32, i32
  }
  func.func @transform_2(%arg0: i32) -> (i32, i32) {
    %c0_i32 = arith.constant 0 : i32
    %c0_i32_0 = arith.constant 0 : i32
    %c0_i32_1 = arith.constant 0 : i32
    return %c0_i32, %c0_i32_0 : i32, i32
  }
  func.func @transform_3(%arg0: i32) -> (i32, i32) {
    %c0_i32 = arith.constant 0 : i32
    %c0_i32_0 = arith.constant 0 : i32
    %c0_i32_1 = arith.constant 0 : i32
    return %c0_i32, %c0_i32_0 : i32, i32
  }
  func.func @transform_4(%arg0: i32) -> (i32, i32) {
    %c0_i32 = arith.constant 0 : i32
    %c0_i32_0 = arith.constant 0 : i32
    %c0_i32_1 = arith.constant 0 : i32
    return %c0_i32, %c0_i32_0 : i32, i32
  }
  func.func @transform_5(%arg0: i32) -> (i32, i32) {
    %c0_i32 = arith.constant 0 : i32
    %c0_i32_0 = arith.constant 0 : i32
    %c0_i32_1 = arith.constant 0 : i32
    return %c0_i32, %c0_i32_0 : i32, i32
  }
  func.func @transform_6(%arg0: i32) -> (i32, i32) {
    %c0_i32 = arith.constant 0 : i32
    %c0_i32_0 = arith.constant 0 : i32
    %c0_i32_1 = arith.constant 0 : i32
    return %c0_i32, %c0_i32_0 : i32, i32
  }
  func.func @transform_7(%arg0: i32) -> (i32, i32) {
    %c0_i32 = arith.constant 0 : i32
    %c0_i32_0 = arith.constant 0 : i32
    return %arg0, %c0_i32 : i32, i32
  }
}

</mosaic_0001>

<llo_original>
// kernel: tpu_custom_call.1
$region0: #{tpu_custom_call.1}
  #allocation0 [shape = 'u32[]', space=smem, size = 0x4, offset = 0x4, fixed_abs, tag = 'smem constant byte address 0x4 - core index']
  #allocation1 [shape = 'u32[144,128]{1,0:T(1,128)}', space=vmem, size = 0x12000, scoped, tag = 'internal scratch']
  #allocation2 [shape = 'f32[1,1]{1,0:T(1,128)S(1)}', space=vmem, size = 0x200, scoped, tag = 'scoped memory for tpu_custom_call.1']
  %s0 = inlined_call_operand.vmem [shape: f32[16,256], index: 0, kind: input, shape index: {}]
  %s1 = inlined_call_operand.vmem [shape: f32[256,64], index: 1, kind: input, shape index: {}]
  %s2 = inlined_call_operand.vmem [shape: f32[1,64], index: 2, kind: input, shape index: {}]
  %s3 = inlined_call_operand.vmem [shape: f32[64,16], index: 3, kind: input, shape index: {}]
  %s4 = inlined_call_operand.vmem [shape: f32[1,16], index: 4, kind: input, shape index: {}]
  %s5 = inlined_call_operand.vmem [shape: f32[1,16], index: 5, kind: input, shape index: {}]
  %s6 = inlined_call_operand.<no memory space> [shape: f32[1,1], index: 6, kind: input, shape index: {}]
  %s7 = inlined_call_operand.vmem [shape: f32[16,1], index: 7, kind: output, shape index: {}]
  %s8 = sld [smem:[#allocation0]]
  $region61: #{tpu_custom_call.1} parent=0
    _
  %s10 = ssub.s32 1, %s8
  %s11 = scalar_select 0, %s10, %s8
  %v12 = vstv %s6
  %13 = vst [vmem:[#allocation2] sm:$0x1] %v12
  loop: start=0, step=1, limit=4
  $region2: #{tpu_custom_call.1} parent=0 // loop_pre_header
    _
  $region3: #{tpu_custom_call.1} parent=0 // loop_header
    %s15 = sphi 0, %s19
    %p16 = scmp.ge.s32.totalorder %s15, 4
    %s25 = sphi 0, %s27
    %s28 = sphi 0, %s25
    %s29 = sphi 0, %s28
    %s45 = sphi 0, %s29
    %s49 = sphi 0, %s49
    %s51 = sphi 0, %s49
    %s52 = sphi 0, %s51
    %s66 = sphi 0, %s52
    %s70 = sphi 0, %s70
    %s72 = sphi 0, %s70
    %s73 = sphi 0, %s72
    %s87 = sphi 0, %s73
    %s91 = sphi 0, %s91
    %s93 = sphi 0, %s91
    %s94 = sphi 0, %s93
    %s108 = sphi 0, %s94
    %s112 = sphi 0, %s112
    %s114 = sphi 0, %s112
    %s115 = sphi 0, %s114
    %s129 = sphi 0, %s115
    %s133 = sphi 0, %s133
    %s135 = sphi 0, %s133
    %s136 = sphi 0, %s135
    %s150 = sphi 0, %s136
    %s154 = sphi 0, %s154
    %s156 = sphi 0, %s154
    %s157 = sphi 0, %s156
    %s171 = sphi 0, %s157
    %s177 = sphi 0, %s179
    %s180 = sphi 0, %s177
    %s181 = sphi 0, %s180
    %s197 = sphi 0, %s181
  $region4: #{tpu_custom_call.1} parent=0 // loop_header_branch
    %18 = sbr.rel (%p16) target = $region8
  $region5: #{tpu_custom_call.1} parent=0 // loop_body
    %s20 = ssub.s32 %s15, 1
    %s21 = ssub.s32 %s15, 2
    %s22 = sadd.s32 %s15, 1
    %s23 = ssub.s32 %s15, %s22
    %p24 = scmp.eq.s32.totalorder %s23, 0
    %s26 = sadd.s32 %s25, 1
    %s27 = scalar_select %p24, %s25, %s26
    %p30 = pneg %p24
    %p31 = scmp.eq.s32.totalorder %s15, 1
    %p32 = por %p30, %p31
    %p33 = scmp.ne.s32.totalorder %s25, %s28
    %p34 = scmp.eq.s32.totalorder %s15, 0
    %p35 = por %p33, %p34
    %p36 = scmp.ne.s32.totalorder %s25, %s28
    %p37 = scmp.eq.s32.totalorder %s20, 1
    %p38 = por %p36, %p37
    %p39 = scmp.ne.s32.totalorder %s28, %s29
    %p40 = scmp.eq.s32.totalorder %s20, 0
    %p41 = por %p39, %p40
    %p42 = scmp.ne.s32.totalorder %s28, %s29
    %p43 = scmp.eq.s32.totalorder %s21, 1
    %p44 = por %p42, %p43
    %p46 = scmp.ne.s32.totalorder %s29, %s45
    %p47 = scmp.eq.s32.totalorder %s21, 0
    %p48 = por %p46, %p47
    %s50 = sadd.s32 %s49, 1
    %p53 = scmp.eq.s32.totalorder %s15, 1
    %p54 = scmp.ne.s32.totalorder %s49, %s51
    %p55 = scmp.eq.s32.totalorder %s15, 0
    %p56 = por %p54, %p55
    %p57 = scmp.ne.s32.totalorder %s49, %s51
    %p58 = scmp.eq.s32.totalorder %s20, 1
    %p59 = por %p57, %p58
    %p60 = scmp.ne.s32.totalorder %s51, %s52
    %p61 = scmp.eq.s32.totalorder %s20, 0
    %p62 = por %p60, %p61
    %p63 = scmp.ne.s32.totalorder %s51, %s52
    %p64 = scmp.eq.s32.totalorder %s21, 1
    %p65 = por %p63, %p64
    %p67 = scmp.ne.s32.totalorder %s52, %s66
    %p68 = scmp.eq.s32.totalorder %s21, 0
    %p69 = por %p67, %p68
    %s71 = sadd.s32 %s70, 1
    %p74 = scmp.eq.s32.totalorder %s15, 1
    %p75 = scmp.ne.s32.totalorder %s70, %s72
    %p76 = scmp.eq.s32.totalorder %s15, 0
    %p77 = por %p75, %p76
    %p78 = scmp.ne.s32.totalorder %s70, %s72
    %p79 = scmp.eq.s32.totalorder %s20, 1
    %p80 = por %p78, %p79
    %p81 = scmp.ne.s32.totalorder %s72, %s73
    %p82 = scmp.eq.s32.totalorder %s20, 0
    %p83 = por %p81, %p82
    %p84 = scmp.ne.s32.totalorder %s72, %s73
    %p85 = scmp.eq.s32.totalorder %s21, 1
    %p86 = por %p84, %p85
    %p88 = scmp.ne.s32.totalorder %s73, %s87
    %p89 = scmp.eq.s32.totalorder %s21, 0
    %p90 = por %p88, %p89
    %s92 = sadd.s32 %s91, 1
    %p95 = scmp.eq.s32.totalorder %s15, 1
    %p96 = scmp.ne.s32.totalorder %s91, %s93
    %p97 = scmp.eq.s32.totalorder %s15, 0
    %p98 = por %p96, %p97
    %p99 = scmp.ne.s32.totalorder %s91, %s93
    %p100 = scmp.eq.s32.totalorder %s20, 1
    %p101 = por %p99, %p100
    %p102 = scmp.ne.s32.totalorder %s93, %s94
    %p103 = scmp.eq.s32.totalorder %s20, 0
    %p104 = por %p102, %p103
    %p105 = scmp.ne.s32.totalorder %s93, %s94
    %p106 = scmp.eq.s32.totalorder %s21, 1
    %p107 = por %p105, %p106
    %p109 = scmp.ne.s32.totalorder %s94, %s108
    %p110 = scmp.eq.s32.totalorder %s21, 0
    %p111 = por %p109, %p110
    %s113 = sadd.s32 %s112, 1
    %p116 = scmp.eq.s32.totalorder %s15, 1
    %p117 = scmp.ne.s32.totalorder %s112, %s114
    %p118 = scmp.eq.s32.totalorder %s15, 0
    %p119 = por %p117, %p118
    %p120 = scmp.ne.s32.totalorder %s112, %s114
    %p121 = scmp.eq.s32.totalorder %s20, 1
    %p122 = por %p120, %p121
    %p123 = scmp.ne.s32.totalorder %s114, %s115
    %p124 = scmp.eq.s32.totalorder %s20, 0
    %p125 = por %p123, %p124
    %p126 = scmp.ne.s32.totalorder %s114, %s115
    %p127 = scmp.eq.s32.totalorder %s21, 1
    %p128 = por %p126, %p127
    %p130 = scmp.ne.s32.totalorder %s115, %s129
    %p131 = scmp.eq.s32.totalorder %s21, 0
    %p132 = por %p130, %p131
    %s134 = sadd.s32 %s133, 1
    %p137 = scmp.eq.s32.totalorder %s15, 1
    %p138 = scmp.ne.s32.totalorder %s133, %s135
    %p139 = scmp.eq.s32.totalorder %s15, 0
    %p140 = por %p138, %p139
    %p141 = scmp.ne.s32.totalorder %s133, %s135
    %p142 = scmp.eq.s32.totalorder %s20, 1
    %p143 = por %p141, %p142
    %p144 = scmp.ne.s32.totalorder %s135, %s136
    %p145 = scmp.eq.s32.totalorder %s20, 0
    %p146 = por %p144, %p145
    %p147 = scmp.ne.s32.totalorder %s135, %s136
    %p148 = scmp.eq.s32.totalorder %s21, 1
    %p149 = por %p147, %p148
    %p151 = scmp.ne.s32.totalorder %s136, %s150
    %p152 = scmp.eq.s32.totalorder %s21, 0
    %p153 = por %p151, %p152
    %s155 = sadd.s32 %s154, 1
    %p158 = scmp.eq.s32.totalorder %s15, 1
    %p159 = scmp.ne.s32.totalorder %s154, %s156
    %p160 = scmp.eq.s32.totalorder %s15, 0
    %p161 = por %p159, %p160
    %p162 = scmp.ne.s32.totalorder %s154, %s156
    %p163 = scmp.eq.s32.totalorder %s20, 1
    %p164 = por %p162, %p163
    %p165 = scmp.ne.s32.totalorder %s156, %s157
    %p166 = scmp.eq.s32.totalorder %s20, 0
    %p167 = por %p165, %p166
    %p168 = scmp.ne.s32.totalorder %s156, %s157
    %p169 = scmp.eq.s32.totalorder %s21, 1
    %p170 = por %p168, %p169
    %p172 = scmp.ne.s32.totalorder %s157, %s171
    %p173 = scmp.eq.s32.totalorder %s21, 0
    %p174 = por %p172, %p173
    %s175 = ssub.s32 %s15, %s22
    %p176 = scmp.eq.s32.totalorder %s175, 0
    %s178 = sadd.s32 %s177, 1
    %s179 = scalar_select %p176, %s177, %s178
    %p182 = pneg %p176
    %p183 = scmp.eq.s32.totalorder %s15, 1
    %p184 = por %p182, %p183
    %p185 = scmp.ne.s32.totalorder %s177, %s180
    %p186 = scmp.eq.s32.totalorder %s15, 0
    %p187 = por %p185, %p186
    %p188 = scmp.ne.s32.totalorder %s177, %s180
    %p189 = scmp.eq.s32.totalorder %s20, 1
    %p190 = por %p188, %p189
    %p191 = scmp.ne.s32.totalorder %s180, %s181
    %p192 = scmp.eq.s32.totalorder %s20, 0
    %p193 = por %p191, %p192
    %p194 = scmp.ne.s32.totalorder %s180, %s181
    %p195 = scmp.eq.s32.totalorder %s21, 1
    %p196 = por %p194, %p195
    %p198 = scmp.ne.s32.totalorder %s181, %s197
    %p199 = scmp.eq.s32.totalorder %s21, 0
    %p200 = por %p198, %p199
    %p201 = scmp.le.s32.totalorder 1, %s15
    %p202 = scmp.lt.s32.totalorder %s15, 3
    %p203 = pnand %p201, %p202
    %p204 = pneg %p203
    // Predicated region
    $region9: #{tpu_custom_call.1} parent=5 // pred_check
      _
    $region10: #{tpu_custom_call.1} parent=5 // pred_check_branch
      %206 = sbr.rel (%p203) target = $region12
    $region11: #{tpu_custom_call.1} parent=5 // pred_region
      %s207 = ssub.s32 %s15, 1
      // Predicated region
      $region13: #{tpu_custom_call.1} parent=11 // pred_check
        %p208 = pneg %p62
      $region14: #{tpu_custom_call.1} parent=11 // pred_check_branch
        %210 = sbr.rel (%p208) target = $region16
      $region15: #{tpu_custom_call.1} parent=11 // pred_region
        _
      $region16: #{tpu_custom_call.1} parent=11 // pred_fallthru
        _
      // Predicated region
      $region17: #{tpu_custom_call.1} parent=11 // pred_check
        %p211 = pneg %p83
      $region18: #{tpu_custom_call.1} parent=11 // pred_check_branch
        %213 = sbr.rel (%p211) target = $region20
      $region19: #{tpu_custom_call.1} parent=11 // pred_region
        _
      $region20: #{tpu_custom_call.1} parent=11 // pred_fallthru
        _
      // Predicated region
      $region21: #{tpu_custom_call.1} parent=11 // pred_check
        %p214 = pneg %p104
      $region22: #{tpu_custom_call.1} parent=11 // pred_check_branch
        %216 = sbr.rel (%p214) target = $region24
      $region23: #{tpu_custom_call.1} parent=11 // pred_region
        _
      $region24: #{tpu_custom_call.1} parent=11 // pred_fallthru
        _
      // Predicated region
      $region25: #{tpu_custom_call.1} parent=11 // pred_check
        %p217 = pneg %p125
      $region26: #{tpu_custom_call.1} parent=11 // pred_check_branch
        %219 = sbr.rel (%p217) target = $region28
      $region27: #{tpu_custom_call.1} parent=11 // pred_region
        _
      $region28: #{tpu_custom_call.1} parent=11 // pred_fallthru
        _
      // Predicated region
      $region29: #{tpu_custom_call.1} parent=11 // pred_check
        %p220 = pneg %p146
      $region30: #{tpu_custom_call.1} parent=11 // pred_check_branch
        %222 = sbr.rel (%p220) target = $region32
      $region31: #{tpu_custom_call.1} parent=11 // pred_region
        _
      $region32: #{tpu_custom_call.1} parent=11 // pred_fallthru
        _
      // Predicated region
      $region33: #{tpu_custom_call.1} parent=11 // pred_check
        %p223 = pneg %p167
      $region34: #{tpu_custom_call.1} parent=11 // pred_check_branch
        %225 = sbr.rel (%p223) target = $region36
      $region35: #{tpu_custom_call.1} parent=11 // pred_region
        _
      $region36: #{tpu_custom_call.1} parent=11 // pred_fallthru
        _
    $region12: #{tpu_custom_call.1} parent=5 // pred_fallthru
      _
    %p226 = scmp.lt.s32.totalorder %s15, 2
    // Predicated region
    $region37: #{tpu_custom_call.1} parent=5 // pred_check
      %p227 = pneg %p226
    $region38: #{tpu_custom_call.1} parent=5 // pred_check_branch
      %229 = sbr.rel (%p227) target = $region40
    $region39: #{tpu_custom_call.1} parent=5 // pred_region
      // Predicated region
      $region41: #{tpu_custom_call.1} parent=39 // pred_check
        %p230 = pneg %p35
      $region42: #{tpu_custom_call.1} parent=39 // pred_check_branch
        %232 = sbr.rel (%p230) target = $region44
      $region43: #{tpu_custom_call.1} parent=39 // pred_region
        %p233 = scmp.lt.s32.totalorder %s15, 1
        %s234 = scalar_select %p233, %s15, 1
        %s235 = smul.addr %s234, 2
        %s236 = smul.addr %s235, 8
        %s237 = scalar_lea.vmem %s0, %s236
      $region44: #{tpu_custom_call.1} parent=39 // pred_fallthru
        _
    $region40: #{tpu_custom_call.1} parent=5 // pred_fallthru
      _
    %p238 = scmp.le.s32.totalorder 1, %s15
    %p239 = scmp.lt.s32.totalorder %s15, 3
    %p240 = pnand %p238, %p239
    %p241 = pneg %p240
    // Predicated region
    $region45: #{tpu_custom_call.1} parent=5 // pred_check
      _
    $region46: #{tpu_custom_call.1} parent=5 // pred_check_branch
      %243 = sbr.rel (%p240) target = $region48
    $region47: #{tpu_custom_call.1} parent=5 // pred_region
      %s244 = ssub.s32 %s15, 1
      %p245 = scmp.lt.s32.totalorder %s20, 1
      %s246 = scalar_select %p245, %s20, 1
      %s247 = smul.addr %s246, 2
      %s248 = smul.addr %s247, 8
      %s249 = scalar_lea.vmem %s0, %s248
      %p250 = pneg %p41
      %p251 = pneg %p38
      %p252 = pneg %p62
      %p253 = pneg %p59
      %p254 = pneg %p83
      %p255 = pneg %p80
      %p256 = pneg %p104
      %p257 = pneg %p101
      %p258 = pneg %p125
      %p259 = pneg %p122
      %p260 = pneg %p146
      %p261 = pneg %p143
      %p262 = pneg %p167
      %p263 = pneg %p164
      %p264 = pneg %p193
      %p265 = pneg %p190
      %p266 = scmp.lt.s32.totalorder %s20, 1
      %s267 = scalar_select %p266, %s20, 1
      %s268 = smul.addr %s267, 8
      %s269 = scalar_lea.vmem %s7, %s268
      %p270 = scmp.lt.s32.totalorder %s20, 1
      %s271 = scalar_select %p270, %s20, 1
      %s272 = smul.addr %s271, 2
      %s273 = smul.addr %s272, 8
      %s274 = scalar_lea.vmem %s0, %s273
      %p275 = scmp.lt.s32.totalorder %s20, 1
      %s276 = scalar_select %p275, %s20, 1
      %s277 = smul.addr %s276, 8
      %s278 = scalar_lea.vmem %s7, %s277
      %v279 = vld [vmem:[%s274] sm:$0xff]
      %v280 = vld [vmem:[%s274 + $0x8] sm:$0xff]
      %v281 = vld [vmem:[%s1] sm:$0xff]
      %v282 = vld [vmem:[%s1 + $0x8] sm:$0xff]
      %v283 = vld [vmem:[%s1 + $0x10] sm:$0xff]
      %v284 = vld [vmem:[%s1 + $0x18] sm:$0xff]
      %v285 = vld [vmem:[%s1 + $0x20] sm:$0xff]
      %v286 = vld [vmem:[%s1 + $0x28] sm:$0xff]
      %v287 = vld [vmem:[%s1 + $0x30] sm:$0xff]
      %v288 = vld [vmem:[%s1 + $0x38] sm:$0xff]
      %v289 = vld [vmem:[%s1 + $0x40] sm:$0xff]
      %v290 = vld [vmem:[%s1 + $0x48] sm:$0xff]
      %v291 = vld [vmem:[%s1 + $0x50] sm:$0xff]
      %v292 = vld [vmem:[%s1 + $0x58] sm:$0xff]
      %v293 = vld [vmem:[%s1 + $0x60] sm:$0xff]
      %v294 = vld [vmem:[%s1 + $0x68] sm:$0xff]
      %v295 = vld [vmem:[%s1 + $0x70] sm:$0xff]
      %v296 = vld [vmem:[%s1 + $0x78] sm:$0xff]
      %v297 = vld [vmem:[%s1 + $0x80] sm:$0xff]
      %v298 = vld [vmem:[%s1 + $0x88] sm:$0xff]
      %v299 = vld [vmem:[%s1 + $0x90] sm:$0xff]
      %v300 = vld [vmem:[%s1 + $0x98] sm:$0xff]
      %v301 = vld [vmem:[%s1 + $0xa0] sm:$0xff]
      %v302 = vld [vmem:[%s1 + $0xa8] sm:$0xff]
      %v303 = vld [vmem:[%s1 + $0xb0] sm:$0xff]
      %v304 = vld [vmem:[%s1 + $0xb8] sm:$0xff]
      %v305 = vld [vmem:[%s1 + $0xc0] sm:$0xff]
      %v306 = vld [vmem:[%s1 + $0xc8] sm:$0xff]
      %v307 = vld [vmem:[%s1 + $0xd0] sm:$0xff]
      %v308 = vld [vmem:[%s1 + $0xd8] sm:$0xff]
      %v309 = vld [vmem:[%s1 + $0xe0] sm:$0xff]
      %v310 = vld [vmem:[%s1 + $0xe8] sm:$0xff]
      %v311 = vld [vmem:[%s1 + $0xf0] sm:$0xff]
      %v312 = vld [vmem:[%s1 + $0xf8] sm:$0xff]
      %v313 = vld [vmem:[%s2] sm:$0x1]
      %v315 = vlaneseq
      %v316 = vshrl.u32 %v315, 7
      %v317 = vsub.s32 0, %v316
      %v318 = vrot.slane %v313, %v317
      %320 = vmatprep.subr.mxu0 0.0
      %321 = vmatpush1.msra.mxu0 %v281
      %322 = vmatprep.subr.mxu0 0.0
      %323 = vmatpush1.msra.mxu0 %v282
      %324 = vmatprep.subr.mxu0 0.0
      %325 = vmatpush1.msra.mxu0 %v283
      %326 = vmatprep.subr.mxu0 0.0
      %327 = vmatpush1.msra.mxu0 %v284
      %328 = vmatprep.subr.mxu0 0.0
      %329 = vmatpush1.msra.mxu0 %v285
      %330 = vmatprep.subr.mxu0 0.0
      %331 = vmatpush1.msra.mxu0 %v286
      %332 = vmatprep.subr.mxu0 0.0
      %333 = vmatpush1.msra.mxu0 %v287
      %334 = vmatprep.subr.mxu0 0.0
      %335 = vmatpush1.msra.mxu0 %v288
      %336 = vmatprep.subr.mxu0 0.0
      %337 = vmatpush1.msra.mxu0 %v289
      %338 = vmatprep.subr.mxu0 0.0
      %339 = vmatpush1.msra.mxu0 %v290
      %340 = vmatprep.subr.mxu0 0.0
      %341 = vmatpush1.msra.mxu0 %v291
      %342 = vmatprep.subr.mxu0 0.0
      %343 = vmatpush1.msra.mxu0 %v292
      %344 = vmatprep.subr.mxu0 0.0
      %345 = vmatpush1.msra.mxu0 %v293
      %346 = vmatprep.subr.mxu0 0.0
      %347 = vmatpush1.msra.mxu0 %v294
      %348 = vmatprep.subr.mxu0 0.0
      %349 = vmatpush1.msra.mxu0 %v295
      %350 = vmatprep.subr.mxu0 0.0
      %351 = vmatpush1.msra.mxu0 %v296
      %352 = vmatprep.subr.mxu0 0.0
      %353 = vmatpush1.msra.mxu0 %v297
      %354 = vmatprep.subr.mxu0 0.0
      %355 = vmatpush1.msra.mxu0 %v298
      %356 = vmatprep.subr.mxu0 0.0
      %357 = vmatpush1.msra.mxu0 %v299
      %358 = vmatprep.subr.mxu0 0.0
      %359 = vmatpush1.msra.mxu0 %v300
      %360 = vmatprep.subr.mxu0 0.0
      %361 = vmatpush1.msra.mxu0 %v301
      %362 = vmatprep.subr.mxu0 0.0
      %363 = vmatpush1.msra.mxu0 %v302
      %364 = vmatprep.subr.mxu0 0.0
      %365 = vmatpush1.msra.mxu0 %v303
      %366 = vmatprep.subr.mxu0 0.0
      %367 = vmatpush1.msra.mxu0 %v304
      %368 = vmatprep.subr.mxu0 0.0
      %369 = vmatpush1.msra.mxu0 %v305
      %370 = vmatprep.subr.mxu0 0.0
      %371 = vmatpush1.msra.mxu0 %v306
      %372 = vmatprep.subr.mxu0 0.0
      %373 = vmatpush1.msra.mxu0 %v307
      %374 = vmatprep.subr.mxu0 0.0
      %375 = vmatpush1.msra.mxu0 %v308
      %376 = vmatprep.subr.mxu0 0.0
      %377 = vmatpush1.msra.mxu0 %v309
      %378 = vmatprep.subr.mxu0 0.0
      %379 = vmatpush1.msra.mxu0 %v310
      %380 = vmatprep.subr.mxu0 0.0
      %381 = vmatpush1.msra.mxu0 %v311
      %382 = vmatprep.subr.mxu0 0.0
      %383 = vmatpush1.msra.mxu0 %v312
      %384 = vmatprep.mubr.f32.mxu0 %v280
      %385 = vmatmul.mubr.f32.gmra.mrb[0].mxu0 %v279
      %v386 = vpop.f32.mrb[0].mxu0
      %v387 = vadd.f32 %v318, %v386
      %v388 = vpop.f32.mrb[0].mxu0
      %389 = vdwg.mxu0
      %v390 = vmax.f32 %v387, 0.0
      %v391 = vld [vmem:[%s3] sm:$0xff]
      %v392 = vld [vmem:[%s3 + $0x8] sm:$0xff]
      %v393 = vld [vmem:[%s3 + $0x10] sm:$0xff]
      %v394 = vld [vmem:[%s3 + $0x18] sm:$0xff]
      %v395 = vld [vmem:[%s3 + $0x20] sm:$0xff]
      %v396 = vld [vmem:[%s3 + $0x28] sm:$0xff]
      %v397 = vld [vmem:[%s3 + $0x30] sm:$0xff]
      %v398 = vld [vmem:[%s3 + $0x38] sm:$0xff]
      %v399 = vld [vmem:[%s4] sm:$0x1]
      %v401 = vlaneseq
      %v402 = vshrl.u32 %v401, 7
      %v403 = vsub.s32 0, %v402
      %v404 = vrot.slane %v399, %v403
      %vm406 = vcmask 523264
      %v408 = vsel %vm406, %v390, 0
      %410 = vmatprep.subr.mxu0 0.0
      %411 = vmatpush1.msra.mxu0 %v391
      %412 = vmatprep.subr.mxu0 0.0
      %413 = vmatpush1.msra.mxu0 %v392
      %414 = vmatprep.subr.mxu0 0.0
      %415 = vmatpush1.msra.mxu0 %v393
      %416 = vmatprep.subr.mxu0 0.0
      %417 = vmatpush1.msra.mxu0 %v394
      %418 = vmatprep.subr.mxu0 0.0
      %419 = vmatpush1.msra.mxu0 %v395
      %420 = vmatprep.subr.mxu0 0.0
      %421 = vmatpush1.msra.mxu0 %v396
      %422 = vmatprep.subr.mxu0 0.0
      %423 = vmatpush1.msra.mxu0 %v397
      %424 = vmatprep.subr.mxu0 0.0
      %425 = vmatpush1.msra.mxu0 %v398
      %426 = vmatprep.subr.mxu0 0.0
      %427 = vmatpush1.msra.mxu0 0.0
      %428 = vmatprep.subr.mxu0 0.0
      %429 = vmatpush1.msra.mxu0 0.0
      %430 = vmatprep.subr.mxu0 0.0
      %431 = vmatpush1.msra.mxu0 0.0
      %432 = vmatprep.subr.mxu0 0.0
      %433 = vmatpush1.msra.mxu0 0.0
      %434 = vmatprep.subr.mxu0 0.0
      %435 = vmatpush1.msra.mxu0 0.0
      %436 = vmatprep.subr.mxu0 0.0
      %437 = vmatpush1.msra.mxu0 0.0
      %438 = vmatprep.subr.mxu0 0.0
      %439 = vmatpush1.msra.mxu0 0.0
      %440 = vmatprep.subr.mxu0 0.0
      %441 = vmatpush1.msra.mxu0 0.0
      %442 = vmatprep.subr.mxu0 0.0
      %443 = vmatpush1.msra.mxu0 0.0
      %444 = vmatprep.subr.mxu0 0.0
      %445 = vmatpush1.msra.mxu0 0.0
      %446 = vmatprep.subr.mxu0 0.0
      %447 = vmatpush1.msra.mxu0 0.0
      %448 = vmatprep.subr.mxu0 0.0
      %449 = vmatpush1.msra.mxu0 0.0
      %450 = vmatprep.subr.mxu0 0.0
      %451 = vmatpush1.msra.mxu0 0.0
      %452 = vmatprep.subr.mxu0 0.0
      %453 = vmatpush1.msra.mxu0 0.0
      %454 = vmatprep.subr.mxu0 0.0
      %455 = vmatpush1.msra.mxu0 0.0
      %456 = vmatprep.subr.mxu0 0.0
      %457 = vmatpush1.msra.mxu0 0.0
      %458 = vmatprep.subr.mxu0 0.0
      %459 = vmatpush1.msra.mxu0 0.0
      %460 = vmatprep.subr.mxu0 0.0
      %461 = vmatpush1.msra.mxu0 0.0
      %462 = vmatprep.subr.mxu0 0.0
      %463 = vmatpush1.msra.mxu0 0.0
      %464 = vmatprep.subr.mxu0 0.0
      %465 = vmatpush1.msra.mxu0 0.0
      %466 = vmatprep.subr.mxu0 0.0
      %467 = vmatpush1.msra.mxu0 0.0
      %468 = vmatprep.subr.mxu0 0.0
      %469 = vmatpush1.msra.mxu0 0.0
      %470 = vmatprep.subr.mxu0 0.0
      %471 = vmatpush1.msra.mxu0 0.0
      %472 = vmatprep.subr.mxu0 0.0
      %473 = vmatpush1.msra.mxu0 0.0
      %474 = vmatprep.mubr.f32.mxu0 0.0
      %475 = vmatmul.mubr.f32.gmra.mrb[0].mxu0 %v408
      %v476 = vpop.f32.mrb[0].mxu0
      %v477 = vadd.f32 %v404, %v476
      %v478 = vpop.f32.mrb[0].mxu0
      %479 = vdwg.mxu0
      %v480 = vmax.f32 %v477, 0.0
      %v481 = vld [vmem:[%s5] sm:$0x1]
      %v483 = vlaneseq
      %v484 = vshrl.u32 %v483, 7
      %v485 = vsub.s32 0, %v484
      %v486 = vrot.slane %v481, %v485
      %v488 = vmul.f32 %v480, %v486
      %vm489 = vcmask 130048
      %v490 = vsel %vm489, %v488, 0.0
      %491 = vadd.xlane.f32.xlu0 %v490
      %v492 = vpop.xlane.xlu0 %491
      %v493 = vld [vmem:[#allocation2] sm:$0x1]
      %v495 = vlaneseq
      %v496 = vshrl.u32 %v495, 7
      %v497 = vsub.s32 0, %v496
      %v498 = vrot.slane %v493, %v497
      %v500 = vadd.f32 %v492, %v498
      %vm501 = vcmask 7168
      %502 = vst.msk [vmem:[%s278] sm:$0xff] %vm501, %v500
      %p503 = scmp.lt.s32.totalorder %s20, 1
      %s504 = scalar_select %p503, %s20, 1
      %s505 = smul.addr %s504, 8
      %s506 = scalar_lea.vmem %s7, %s505
      // Predicated region
      $region49: #{tpu_custom_call.1} parent=47 // pred_check
        %p507 = pneg %p190
      $region50: #{tpu_custom_call.1} parent=47 // pred_check_branch
        %509 = sbr.rel (%p507) target = $region52
      $region51: #{tpu_custom_call.1} parent=47 // pred_region
        _
      $region52: #{tpu_custom_call.1} parent=47 // pred_fallthru
        _
    $region48: #{tpu_custom_call.1} parent=5 // pred_fallthru
      _
    %p510 = scmp.le.s32.totalorder 2, %s15
    // Predicated region
    $region53: #{tpu_custom_call.1} parent=5 // pred_check
      %p511 = pneg %p510
    $region54: #{tpu_custom_call.1} parent=5 // pred_check_branch
      %513 = sbr.rel (%p511) target = $region56
    $region55: #{tpu_custom_call.1} parent=5 // pred_region
      %s514 = ssub.s32 %s15, 2
      // Predicated region
      $region57: #{tpu_custom_call.1} parent=55 // pred_check
        %p515 = pneg %p196
      $region58: #{tpu_custom_call.1} parent=55 // pred_check_branch
        %517 = sbr.rel (%p515) target = $region60
      $region59: #{tpu_custom_call.1} parent=55 // pred_region
        %p518 = scmp.lt.s32.totalorder %s21, 1
        %s519 = scalar_select %p518, %s21, 1
        %s520 = smul.addr %s519, 8
        %s521 = scalar_lea.vmem %s7, %s520
      $region60: #{tpu_custom_call.1} parent=55 // pred_fallthru
        _
    $region56: #{tpu_custom_call.1} parent=5 // pred_fallthru
      _
  $region6: #{tpu_custom_call.1} parent=0 // loop_footer
    %s19 = sadd.s32 1, %s15
  $region7: #{tpu_custom_call.1} parent=0 // loop_footer_branch
    %14 = sbr.rel target = $region3
  $region8: #{tpu_custom_call.1} parent=0 // loop_exit
    _

</llo_original>
